<compile_context>
chip_gen: v5e
topology: v5e:2x2
jax: 0.10.0
libtpu: 0.0.40
codegen_flags: <defaults>
</compile_context>

<pallas_src>
import jax
import jax.numpy as jnp
from jax.experimental import pallas as pl
from jax.experimental.pallas import tpu as pltpu


def _round_up(n, m):
    return ((n + m - 1) // m) * m


def _default_group_size():
    """G=32 on v6e/v7x (2x256 MXU, fully dense 128-lane output); G=8 on v5e
    and older generations (keep extra vmatmul passes bounded on 4x128 MXUs)."""
    try:
        kind = jax.devices()[0].device_kind.lower()
    except Exception:
        return 8
    return 32 if ("v6" in kind or "v7" in kind) else 8


def _value_net_kernel(x_ref, w1_ref, b1_ref, w2_ref, b2_ref, w3_ref, b3_ref, o_ref):
    # Cast the streamed tile in-kernel (no-op for f32 weights); all matmuls
    # accumulate in f32, bias-add + ReLU stay f32, final cast to output dtype.
    x = x_ref[...].astype(w1_ref.dtype)
    h1 = jnp.dot(x, w1_ref[...], preferred_element_type=jnp.float32)
    h1 = jnp.maximum(h1 + b1_ref[...], 0.0)
    h2 = jnp.dot(h1.astype(w2_ref.dtype), w2_ref[...],
                 preferred_element_type=jnp.float32)
    h2 = jnp.maximum(h2 + b2_ref[...], 0.0)
    out = jnp.dot(h2.astype(w3_ref.dtype), w3_ref[...],
                  preferred_element_type=jnp.float32)
    o_ref[...] = (out + b3_ref[...]).astype(o_ref.dtype)


def xavier_uniform(key, fan_in, fan_out, dtype=jnp.float32):
    # Matches torch.nn.init.xavier_uniform_ (gain=1.0)
    limit = (6.0 / (fan_in + fan_out)) ** 0.5
    return jax.random.uniform(key, (fan_in, fan_out), dtype, -limit, limit)


def init_value_network_params(key, state_dim, action_dim, hidden_size):
    k1, k2, k3 = jax.random.split(key, 3)
    # Stored as (in_features, out_features) == W.T of the PyTorch layer;
    # xavier_uniform is symmetric in fan_in/fan_out so the distribution matches.
    return {
        "w1": xavier_uniform(k1, state_dim, hidden_size),
        "b1": jnp.full((1, hidden_size), 0.01, jnp.float32),
        "w2": xavier_uniform(k2, hidden_size, hidden_size),
        "b2": jnp.full((1, hidden_size), 0.01, jnp.float32),
        "w3": xavier_uniform(k3, hidden_size, action_dim),
        "b3": jnp.full((1, action_dim), 0.01, jnp.float32),
    }


def pack_value_network_params(params, group_size=None, compute_dtype=None):
    """Build block-diagonal weights / G-tiled biases ONCE (not per call).

    Packing G batch rows into one wide row makes the kernel's streamed I/O
    lane-dense while leaving the per-row math unchanged (group g only ever
    multiplies against the g-th diagonal block).  `compute_dtype` (e.g. bf16)
    is applied to the weights only — activations are cast inside the kernel,
    never in a separate wrapper HBM pass.
    """
    G = _default_group_size() if group_size is None else int(group_size)

    def block_diag(w):
        fi, fo = w.shape
        eye = jnp.eye(G, dtype=w.dtype)
        # out[g*fi + s, g2*fo + h] = w[s, h] if g == g2 else 0
        return (eye[:, None, :, None] * w[None, :, None, :]).reshape(G * fi, G * fo)

    w1, w2, w3 = params["w1"], params["w2"], params["w3"]
    if compute_dtype is not None:
        w1, w2, w3 = (w.astype(compute_dtype) for w in (w1, w2, w3))
    return {
        "G": G,
        "w1": block_diag(w1), "b1": jnp.tile(params["b1"], (1, G)),
        "w2": block_diag(w2), "b2": jnp.tile(params["b2"], (1, G)),
        "w3": block_diag(w3), "b3": jnp.tile(params["b3"], (1, G)),
    }


def value_network_forward(x, packed, *, tile_b=8192):
    """x: (B, state_dim) -> (B, action_dim) using packed block-diagonal params.

    tile_b: batch rows (unpacked) per grid step; converted to packed rows.
    Default 8192 rows (= 256 packed rows at G=32): x tile 512 KiB, out tile
    128 KiB, h1/h2 intermediates ~1 MiB each — comfortably inside VMEM while
    amortizing the ~0.35 us per-grid-step overhead.
    """
    G = packed["G"]
    w1, b1 = packed["w1"], packed["b1"]
    w2, b2 = packed["w2"], packed["b2"]
    w3, b3 = packed["w3"], packed["b3"]
    gS, gH, gA = w1.shape[0], w2.shape[0], w3.shape[1]
    S, A = gS // G, gA // G

    out_dtype = x.dtype
    B = x.shape[0]
    assert x.shape[1] == S, (x.shape, S)

    # Pad only up to a multiple of G, and only when needed.  The grid below is
    # a cdiv grid: there is NO padding to the tile size — Pallas masks the
    # out-of-bounds writes of the ragged final block (rows are independent).
    Bpad = _round_up(B, G)
    if Bpad != B:
        x = jnp.pad(x, ((0, Bpad - B), (0, 0)))
    Bg = Bpad // G
    xp = x.reshape(Bg, gS)            # contiguous row-major => free reshape

    # Packed-row tile: aim for >=2 grid steps (v7x dual-TC sharding; harmless
    # on v5e/v6e), keep a multiple of 8 sublanes, or fall back to a single
    # full-extent block for tiny batches.
    tr = max(1, tile_b // G)
    tr = min(tr, pl.cdiv(Bg, 2))
    tr = max(8, (tr // 8) * 8)
    if tr >= Bg:
        tr = Bg
    grid = (pl.cdiv(Bg, tr),)

    w_itemsize = jnp.dtype(w1.dtype).itemsize
    cost = pl.CostEstimate(
        flops=2 * Bg * (gS * gH + gH * gH + gH * gA),
        transcendentals=0,
        bytes_accessed=(
            Bg * gS * jnp.dtype(x.dtype).itemsize        # streamed x reads
            + Bg * gA * jnp.dtype(out_dtype).itemsize    # streamed out writes
            + (gS * gH + gH * gH + gH * gA) * w_itemsize # weights, loaded once
            + (2 * gH + gA) * 4                          # biases, loaded once
        ),
    )

    # Constant index_map => DMA'd once, resident in VMEM across all grid steps.
    resident = lambda a: pl.BlockSpec(a.shape, lambda i: (0, 0))

    out_p = pl.pallas_call(
        _value_net_kernel,
        out_shape=jax.ShapeDtypeStruct((Bg, gA), out_dtype),
        grid=grid,
        in_specs=[
            pl.BlockSpec((tr, gS), lambda i: (i, 0)),    # streamed, lane-dense
            resident(w1), resident(b1),
            resident(w2), resident(b2),
            resident(w3), resident(b3),
        ],
        out_specs=pl.BlockSpec((tr, gA), lambda i: (i, 0)),
        compiler_params=pltpu.CompilerParams(
            dimension_semantics=("parallel",),
            # Double-buffered block-diagonal weights (<= ~13 MiB f32 at G=32)
            # plus streamed tiles fit under this on every TPU generation.
            vmem_limit_bytes=32 * 1024 * 1024,
        ),
        cost_estimate=cost,
    )(xp, w1, b1, w2, b2, w3, b3)

    out = out_p.reshape(Bpad, A)      # free: contiguous
    return out[:B] if Bpad != B else out


def _ref_forward(x, p):
    h = jnp.maximum(x @ p["w1"] + p["b1"], 0.0)
    h = jnp.maximum(h @ p["w2"] + p["b2"], 0.0)
    return h @ p["w3"] + p["b3"]


if __name__ == "__main__":
    state_dim, action_dim, hidden_size = 16, 4, 32

    key = jax.random.PRNGKey(0)
    kp, kx1, kx2 = jax.random.split(key, 3)
    params = init_value_network_params(kp, state_dim, action_dim, hidden_size)

    # --- Test A: tiny batch, device-default group size (exercises the
    # pad-to-G path and a single full-extent block). ---
    packed_def = pack_value_network_params(params)
    x_small = jax.random.normal(kx1, (8, state_dim), jnp.float32)
    out_small = value_network_forward(x_small, packed_def)
    jax.block_until_ready(out_small)
    assert out_small.shape == (8, action_dim)
    assert jnp.allclose(out_small, _ref_forward(x_small, params),
                        atol=1e-4, rtol=1e-4)

    # --- Test B: G=8, B % G == 0 (no pad at all), ragged cdiv grid
    # (Bg=125, tile=32 packed rows -> blocks 32/32/32/29 with masked final
    # writes), multi-step pipeline with resident weights. ---
    packed_g8 = pack_value_network_params(params, group_size=8)
    x_big = jax.random.normal(kx2, (1000, state_dim), jnp.float32)
    out_big = value_network_forward(x_big, packed_g8, tile_b=256)
    jax.block_until_ready(out_big)
    assert out_big.shape == (1000, action_dim)
    assert jnp.allclose(out_big, _ref_forward(x_big, params),
                        atol=1e-4, rtol=1e-4)

    # --- Test C: G=32 (fully lane-dense, 128-wide output stores), bf16
    # weights with f32 accumulation, B % G != 0 (pad-to-G path), 2 grid
    # steps. ---
    packed_g32_bf16 = pack_value_network_params(params, group_size=32,
                                                compute_dtype=jnp.bfloat16)
    out_bf16 = value_network_forward(x_big, packed_g32_bf16, tile_b=512)
    jax.block_until_ready(out_bf16)
    assert out_bf16.shape == (1000, action_dim)
    assert jnp.allclose(out_bf16, _ref_forward(x_big, params),
                        atol=1e-1, rtol=1e-1)

    print("KERNEL_OK")
</pallas_src>

<mosaic_0001>
module attributes {stable_mosaic.version = 11 : i64} {
  func.func @_value_net_kernel(%arg0: i32, %arg1: memref<1x128xf32, #tpu.memory_space<vmem>>, %arg2: memref<128x256xf32, #tpu.memory_space<vmem>>, %arg3: memref<1x256xf32, #tpu.memory_space<vmem>>, %arg4: memref<256x256xf32, #tpu.memory_space<vmem>>, %arg5: memref<1x256xf32, #tpu.memory_space<vmem>>, %arg6: memref<256x32xf32, #tpu.memory_space<vmem>>, %arg7: memref<1x32xf32, #tpu.memory_space<vmem>>, %arg8: memref<1x32xf32, #tpu.memory_space<vmem>>) attributes {dimension_semantics = [#tpu.dimension_semantics<parallel>], iteration_bounds = array<i64: 1>, scalar_prefetch = 0 : i64, scratch_operands = 0 : i64, tpu.core_type = #tpu.core_type<tc>, window_params = [{transform_indices = @transform_0, window_bounds = array<i64: 1, 128>}, {pipeline_mode = #tpu.pipeline_mode<synchronous>, transform_indices = @transform_1, window_bounds = array<i64: 128, 256>}, {pipeline_mode = #tpu.pipeline_mode<synchronous>, transform_indices = @transform_2, window_bounds = array<i64: 1, 256>}, {pipeline_mode = #tpu.pipeline_mode<synchronous>, transform_indices = @transform_3, window_bounds = array<i64: 256, 256>}, {pipeline_mode = #tpu.pipeline_mode<synchronous>, transform_indices = @transform_4, window_bounds = array<i64: 1, 256>}, {pipeline_mode = #tpu.pipeline_mode<synchronous>, transform_indices = @transform_5, window_bounds = array<i64: 256, 32>}, {pipeline_mode = #tpu.pipeline_mode<synchronous>, transform_indices = @transform_6, window_bounds = array<i64: 1, 32>}, {transform_indices = @transform_7, window_bounds = array<i64: 1, 32>}]} {
    %c0 = arith.constant 0 : index
    %c0_0 = arith.constant 0 : index
    %0 = vector.load %arg1[%c0, %c0_0] : memref<1x128xf32, #tpu.memory_space<vmem>>, vector<1x128xf32>
    %c0_1 = arith.constant 0 : index
    %c0_2 = arith.constant 0 : index
    %1 = vector.load %arg2[%c0_1, %c0_2] : memref<128x256xf32, #tpu.memory_space<vmem>>, vector<128x256xf32>
    %cst = arith.constant dense<0.000000e+00> : vector<1x256xf32>
    %2 = tpu.matmul %0, %1, %cst {dimension_numbers = #tpu.dot_dimension_numbers<[1], [0], [0], [1], [0, 0, 1, 1], [], []>} : vector<1x128xf32>, vector<128x256xf32>, vector<1x256xf32> -> vector<1x256xf32>
    %c0_3 = arith.constant 0 : index
    %c0_4 = arith.constant 0 : index
    %3 = vector.load %arg3[%c0_3, %c0_4] : memref<1x256xf32, #tpu.memory_space<vmem>>, vector<1x256xf32>
    %4 = arith.addf %2, %3 : vector<1x256xf32>
    %cst_5 = arith.constant 0.000000e+00 : f32
    %5 = vector.broadcast %cst_5 : f32 to vector<1x256xf32>
    %6 = arith.maximumf %4, %5 : vector<1x256xf32>
    %c0_6 = arith.constant 0 : index
    %c0_7 = arith.constant 0 : index
    %7 = vector.load %arg4[%c0_6, %c0_7] : memref<256x256xf32, #tpu.memory_space<vmem>>, vector<256x256xf32>
    %cst_8 = arith.constant dense<0.000000e+00> : vector<1x256xf32>
    %8 = tpu.matmul %6, %7, %cst_8 {dimension_numbers = #tpu.dot_dimension_numbers<[1], [0], [0], [1], [0, 0, 1, 1], [], []>} : vector<1x256xf32>, vector<256x256xf32>, vector<1x256xf32> -> vector<1x256xf32>
    %c0_9 = arith.constant 0 : index
    %c0_10 = arith.constant 0 : index
    %9 = vector.load %arg5[%c0_9, %c0_10] : memref<1x256xf32, #tpu.memory_space<vmem>>, vector<1x256xf32>
    %10 = arith.addf %8, %9 : vector<1x256xf32>
    %cst_11 = arith.constant 0.000000e+00 : f32
    %11 = vector.broadcast %cst_11 : f32 to vector<1x256xf32>
    %12 = arith.maximumf %10, %11 : vector<1x256xf32>
    %c0_12 = arith.constant 0 : index
    %c0_13 = arith.constant 0 : index
    %13 = vector.load %arg6[%c0_12, %c0_13] : memref<256x32xf32, #tpu.memory_space<vmem>>, vector<256x32xf32>
    %cst_14 = arith.constant dense<0.000000e+00> : vector<1x32xf32>
    %14 = tpu.matmul %12, %13, %cst_14 {dimension_numbers = #tpu.dot_dimension_numbers<[1], [0], [0], [1], [0, 0, 1, 1], [], []>} : vector<1x256xf32>, vector<256x32xf32>, vector<1x32xf32> -> vector<1x32xf32>
    %c0_15 = arith.constant 0 : index
    %c0_16 = arith.constant 0 : index
    %15 = vector.load %arg7[%c0_15, %c0_16] : memref<1x32xf32, #tpu.memory_space<vmem>>, vector<1x32xf32>
    %16 = arith.addf %14, %15 : vector<1x32xf32>
    %c0_17 = arith.constant 0 : index
    %c0_18 = arith.constant 0 : index
    %17 = vector.load %arg8[%c0_17, %c0_18] : memref<1x32xf32, #tpu.memory_space<vmem>>, vector<1x32xf32>
    tpu.vector_store %arg8[%c0_17, %c0_18], %16 {strides = array<i32>} : memref<1x32xf32, #tpu.memory_space<vmem>>, vector<1x32xf32>,
    return
  }
  func.func @transform_0(%arg0: i32) -> (i32, i32) {
    %c0_i32 = arith.constant 0 : i32
    %c0_i32_0 = arith.constant 0 : i32
    return %arg0, %c0_i32 : i32, i32
  }
  func.func @transform_1(%arg0: i32) -> (i32, i32) {
    %c0_i32 = arith.constant 0 : i32
    %c0_i32_0 = arith.constant 0 : i32
    %c0_i32_1 = arith.constant 0 : i32
    return %c0_i32, %c0_i32_0 : i32, i32
  }
  func.func @transform_2(%arg0: i32) -> (i32, i32) {
    %c0_i32 = arith.constant 0 : i32
    %c0_i32_0 = arith.constant 0 : i32
    %c0_i32_1 = arith.constant 0 : i32
    return %c0_i32, %c0_i32_0 : i32, i32
  }
  func.func @transform_3(%arg0: i32) -> (i32, i32) {
    %c0_i32 = arith.constant 0 : i32
    %c0_i32_0 = arith.constant 0 : i32
    %c0_i32_1 = arith.constant 0 : i32
    return %c0_i32, %c0_i32_0 : i32, i32
  }
  func.func @transform_4(%arg0: i32) -> (i32, i32) {
    %c0_i32 = arith.constant 0 : i32
    %c0_i32_0 = arith.constant 0 : i32
    %c0_i32_1 = arith.constant 0 : i32
    return %c0_i32, %c0_i32_0 : i32, i32
  }
  func.func @transform_5(%arg0: i32) -> (i32, i32) {
    %c0_i32 = arith.constant 0 : i32
    %c0_i32_0 = arith.constant 0 : i32
    %c0_i32_1 = arith.constant 0 : i32
    return %c0_i32, %c0_i32_0 : i32, i32
  }
  func.func @transform_6(%arg0: i32) -> (i32, i32) {
    %c0_i32 = arith.constant 0 : i32
    %c0_i32_0 = arith.constant 0 : i32
    %c0_i32_1 = arith.constant 0 : i32
    return %c0_i32, %c0_i32_0 : i32, i32
  }
  func.func @transform_7(%arg0: i32) -> (i32, i32) {
    %c0_i32 = arith.constant 0 : i32
    %c0_i32_0 = arith.constant 0 : i32
    return %arg0, %c0_i32 : i32, i32
  }
}

</mosaic_0001>

<llo_original>
// kernel: tpu_custom_call.1
$region0: #{tpu_custom_call.1}
  #allocation0 [shape = 'u32[]', space=smem, size = 0x4, offset = 0x4, fixed_abs, tag = 'smem constant byte address 0x4 - core index']
  #allocation1 [shape = 'u32[72,128]{1,0:T(1,128)}', space=vmem, size = 0x9000, scoped, tag = 'internal scratch']
  %s0 = inlined_call_operand.vmem [shape: f32[1,128], index: 0, kind: input, shape index: {}]
  %s1 = inlined_call_operand.vmem [shape: f32[128,256], index: 1, kind: input, shape index: {}]
  %s2 = inlined_call_operand.vmem [shape: f32[1,256], index: 2, kind: input, shape index: {}]
  %s3 = inlined_call_operand.hbm [shape: f32[256,256], index: 3, kind: input, shape index: {}]
  %s4 = inlined_call_operand.vmem [shape: f32[1,256], index: 4, kind: input, shape index: {}]
  %s5 = inlined_call_operand.vmem [shape: f32[256,32], index: 5, kind: input, shape index: {}]
  %s6 = inlined_call_operand.vmem [shape: f32[1,32], index: 6, kind: input, shape index: {}]
  %s7 = inlined_call_operand.hbm [shape: f32[1,32], index: 7, kind: output, shape index: {}]
  %s8 = sld [smem:[#allocation0]]
  $region42: #{tpu_custom_call.1} parent=0
    _
  %s10 = ssub.s32 1, %s8
  %s11 = scalar_select 0, %s10, %s8
  $region1: #{tpu_custom_call.1} parent=0
    #allocation2 [shape = 'u8[262144]{0}', space=vmem, size = 0x40000, scoped, tag = 'input window, operand 3, single buffered']
    #allocation3 [shape = 's32[1]{0}', space=sflag, size = 0x4, scoped, tag = 'scoped memory for tpu_custom_call.1']
    #allocation4 [shape = 's32[1]{0}', space=sflag, size = 0x4, scoped, tag = 'scoped memory for tpu_custom_call.1']
    #allocation5 [shape = 'u8[512]{0}', space=vmem, size = 0x400, scoped, tag = 'output window, operand 0, single buffered']
    %12 = vsyncpa [#allocation3], 0
    %13 = vsyncpa [#allocation4], 0
    // Predicated region
    $region2: #{tpu_custom_call.1} parent=1 // pred_check
      _
    $region3: #{tpu_custom_call.1} parent=1 // pred_check_branch
      %15 = sbr.rel (0) target = $region5
    $region4: #{tpu_custom_call.1} parent=1 // pred_region
      _
    $region5: #{tpu_custom_call.1} parent=1 // pred_fallthru
      _
    // Predicated region
    $region6: #{tpu_custom_call.1} parent=1 // pred_check
      _
    $region7: #{tpu_custom_call.1} parent=1 // pred_check_branch
      %17 = sbr.rel (0) target = $region9
    $region8: #{tpu_custom_call.1} parent=1 // pred_region
      _
    $region9: #{tpu_custom_call.1} parent=1 // pred_fallthru
      _
    // Predicated region
    $region10: #{tpu_custom_call.1} parent=1 // pred_check
      _
    $region11: #{tpu_custom_call.1} parent=1 // pred_check_branch
      %19 = sbr.rel (0) target = $region13
    $region12: #{tpu_custom_call.1} parent=1 // pred_region
      _
    $region13: #{tpu_custom_call.1} parent=1 // pred_fallthru
      _
    // Predicated region
    $region14: #{tpu_custom_call.1} parent=1 // pred_check
      _
    $region15: #{tpu_custom_call.1} parent=1 // pred_check_branch
      %21 = sbr.rel (0) target = $region17
    $region16: #{tpu_custom_call.1} parent=1 // pred_region
      %23 = vsyncadd [#allocation3], 0
      %s24 = sshll.u32 %s3, 4
      %s25 = int_to_ptr.hbm [resolvable:$true] %s24
      %s26 = sshll.u32 [#allocation2], 4
      %s27 = int_to_ptr.vmem [resolvable:$true] %s26
      %32 = dma.hbm_to_vmem [thread:$0]  %s25, 8192, %s27, [#allocation3], 256, 256, 16
    $region17: #{tpu_custom_call.1} parent=1 // pred_fallthru
      _
    // Predicated region
    $region18: #{tpu_custom_call.1} parent=1 // pred_check
      _
    $region19: #{tpu_custom_call.1} parent=1 // pred_check_branch
      %34 = sbr.rel (0) target = $region21
    $region20: #{tpu_custom_call.1} parent=1 // pred_region
      _
    $region21: #{tpu_custom_call.1} parent=1 // pred_fallthru
      _
    // Predicated region
    $region22: #{tpu_custom_call.1} parent=1 // pred_check
      _
    $region23: #{tpu_custom_call.1} parent=1 // pred_check_branch
      %36 = sbr.rel (0) target = $region25
    $region24: #{tpu_custom_call.1} parent=1 // pred_region
      _
    $region25: #{tpu_custom_call.1} parent=1 // pred_fallthru
      _
    // Predicated region
    $region26: #{tpu_custom_call.1} parent=1 // pred_check
      _
    $region27: #{tpu_custom_call.1} parent=1 // pred_check_branch
      %38 = sbr.rel (0) target = $region29
    $region28: #{tpu_custom_call.1} parent=1 // pred_region
      _
    $region29: #{tpu_custom_call.1} parent=1 // pred_fallthru
      _
    // Predicated region
    $region30: #{tpu_custom_call.1} parent=1 // pred_check
      _
    $region31: #{tpu_custom_call.1} parent=1 // pred_check_branch
      %40 = sbr.rel (0) target = $region33
    $region32: #{tpu_custom_call.1} parent=1 // pred_region
      %42 = dma.done [#allocation3], 8192
    $region33: #{tpu_custom_call.1} parent=1 // pred_fallthru
      _
    %v43 = vld [vmem:[%s0] sm:$0x1]
    %v44 = vld [vmem:[%s1] sm:$0xff]
    %v45 = vld [vmem:[%s1 + $0x8] sm:$0xff]
    %v46 = vld [vmem:[%s1 + $0x10] sm:$0xff]
    %v47 = vld [vmem:[%s1 + $0x18] sm:$0xff]
    %v48 = vld [vmem:[%s1 + $0x20] sm:$0xff]
    %v49 = vld [vmem:[%s1 + $0x28] sm:$0xff]
    %v50 = vld [vmem:[%s1 + $0x30] sm:$0xff]
    %v51 = vld [vmem:[%s1 + $0x38] sm:$0xff]
    %v52 = vld [vmem:[%s1 + $0x40] sm:$0xff]
    %v53 = vld [vmem:[%s1 + $0x48] sm:$0xff]
    %v54 = vld [vmem:[%s1 + $0x50] sm:$0xff]
    %v55 = vld [vmem:[%s1 + $0x58] sm:$0xff]
    %v56 = vld [vmem:[%s1 + $0x60] sm:$0xff]
    %v57 = vld [vmem:[%s1 + $0x68] sm:$0xff]
    %v58 = vld [vmem:[%s1 + $0x70] sm:$0xff]
    %v59 = vld [vmem:[%s1 + $0x78] sm:$0xff]
    %v60 = vld [vmem:[%s1 + $0x80] sm:$0xff]
    %v61 = vld [vmem:[%s1 + $0x88] sm:$0xff]
    %v62 = vld [vmem:[%s1 + $0x90] sm:$0xff]
    %v63 = vld [vmem:[%s1 + $0x98] sm:$0xff]
    %v64 = vld [vmem:[%s1 + $0xa0] sm:$0xff]
    %v65 = vld [vmem:[%s1 + $0xa8] sm:$0xff]
    %v66 = vld [vmem:[%s1 + $0xb0] sm:$0xff]
    %v67 = vld [vmem:[%s1 + $0xb8] sm:$0xff]
    %v68 = vld [vmem:[%s1 + $0xc0] sm:$0xff]
    %v69 = vld [vmem:[%s1 + $0xc8] sm:$0xff]
    %v70 = vld [vmem:[%s1 + $0xd0] sm:$0xff]
    %v71 = vld [vmem:[%s1 + $0xd8] sm:$0xff]
    %v72 = vld [vmem:[%s1 + $0xe0] sm:$0xff]
    %v73 = vld [vmem:[%s1 + $0xe8] sm:$0xff]
    %v74 = vld [vmem:[%s1 + $0xf0] sm:$0xff]
    %v75 = vld [vmem:[%s1 + $0xf8] sm:$0xff]
    %v76 = vld [vmem:[%s2] sm:$0x3]
    %v78 = vperm.slane %v76, 0
    %v79 = vperm.slane %v76, 1
    %82 = vmatpush.msra.mxu0 %v74
    %83 = vmatpush.msra.mxu0 %v72
    %84 = vmatpush.msra.mxu0 %v70
    %85 = vmatpush.msra.mxu0 %v68
    %86 = vmatpush.msra.mxu0 %v66
    %87 = vmatpush.msra.mxu0 %v64
    %88 = vmatpush.msra.mxu0 %v62
    %89 = vmatpush.msra.mxu0 %v60
    %90 = vmatpush.msra.mxu0 %v58
    %91 = vmatpush.msra.mxu0 %v56
    %92 = vmatpush.msra.mxu0 %v54
    %93 = vmatpush.msra.mxu0 %v52
    %94 = vmatpush.msra.mxu0 %v50
    %95 = vmatpush.msra.mxu0 %v48
    %96 = vmatpush.msra.mxu0 %v46
    %97 = vmatpush.msra.mxu0 %v44
    %98 = vmatmul.f32.gmra.mxu0 %v43
    %v99 = vpop.f32.mrf.mxu0
    %v100 = vadd.f32 %v78, %v99
    %101 = vdwg.mxu0
    %102 = vmatpush.msra.mxu0 %v75
    %103 = vmatpush.msra.mxu0 %v73
    %104 = vmatpush.msra.mxu0 %v71
    %105 = vmatpush.msra.mxu0 %v69
    %106 = vmatpush.msra.mxu0 %v67
    %107 = vmatpush.msra.mxu0 %v65
    %108 = vmatpush.msra.mxu0 %v63
    %109 = vmatpush.msra.mxu0 %v61
    %110 = vmatpush.msra.mxu0 %v59
    %111 = vmatpush.msra.mxu0 %v57
    %112 = vmatpush.msra.mxu0 %v55
    %113 = vmatpush.msra.mxu0 %v53
    %114 = vmatpush.msra.mxu0 %v51
    %115 = vmatpush.msra.mxu0 %v49
    %116 = vmatpush.msra.mxu0 %v47
    %117 = vmatpush.msra.mxu0 %v45
    %118 = vmatmul.f32.gmra.mxu0 %v43
    %v119 = vpop.f32.mrf.mxu0
    %v120 = vadd.f32 %v79, %v119
    %121 = vdwg.mxu0
    %v122 = vmax.f32 %v100, 0.0
    %v123 = vmax.f32 %v120, 0.0
    %v124 = vld [vmem:[#allocation2] sm:$0xff]
    %v125 = vld [vmem:[#allocation2 + $0x8] sm:$0xff]
    %v126 = vld [vmem:[#allocation2 + $0x10] sm:$0xff]
    %v127 = vld [vmem:[#allocation2 + $0x18] sm:$0xff]
    %v128 = vld [vmem:[#allocation2 + $0x20] sm:$0xff]
    %v129 = vld [vmem:[#allocation2 + $0x28] sm:$0xff]
    %v130 = vld [vmem:[#allocation2 + $0x30] sm:$0xff]
    %v131 = vld [vmem:[#allocation2 + $0x38] sm:$0xff]
    %v132 = vld [vmem:[#allocation2 + $0x40] sm:$0xff]
    %v133 = vld [vmem:[#allocation2 + $0x48] sm:$0xff]
    %v134 = vld [vmem:[#allocation2 + $0x50] sm:$0xff]
    %v135 = vld [vmem:[#allocation2 + $0x58] sm:$0xff]
    %v136 = vld [vmem:[#allocation2 + $0x60] sm:$0xff]
    %v137 = vld [vmem:[#allocation2 + $0x68] sm:$0xff]
    %v138 = vld [vmem:[#allocation2 + $0x70] sm:$0xff]
    %v139 = vld [vmem:[#allocation2 + $0x78] sm:$0xff]
    %v140 = vld [vmem:[#allocation2 + $0x80] sm:$0xff]
    %v141 = vld [vmem:[#allocation2 + $0x88] sm:$0xff]
    %v142 = vld [vmem:[#allocation2 + $0x90] sm:$0xff]
    %v143 = vld [vmem:[#allocation2 + $0x98] sm:$0xff]
    %v144 = vld [vmem:[#allocation2 + $0xa0] sm:$0xff]
    %v145 = vld [vmem:[#allocation2 + $0xa8] sm:$0xff]
    %v146 = vld [vmem:[#allocation2 + $0xb0] sm:$0xff]
    %v147 = vld [vmem:[#allocation2 + $0xb8] sm:$0xff]
    %v148 = vld [vmem:[#allocation2 + $0xc0] sm:$0xff]
    %v149 = vld [vmem:[#allocation2 + $0xc8] sm:$0xff]
    %v150 = vld [vmem:[#allocation2 + $0xd0] sm:$0xff]
    %v151 = vld [vmem:[#allocation2 + $0xd8] sm:$0xff]
    %v152 = vld [vmem:[#allocation2 + $0xe0] sm:$0xff]
    %v153 = vld [vmem:[#allocation2 + $0xe8] sm:$0xff]
    %v154 = vld [vmem:[#allocation2 + $0xf0] sm:$0xff]
    %v155 = vld [vmem:[#allocation2 + $0xf8] sm:$0xff]
    %v156 = vld [vmem:[#allocation2 + $0x100] sm:$0xff]
    %v157 = vld [vmem:[#allocation2 + $0x108] sm:$0xff]
    %v158 = vld [vmem:[#allocation2 + $0x110] sm:$0xff]
    %v159 = vld [vmem:[#allocation2 + $0x118] sm:$0xff]
    %v160 = vld [vmem:[#allocation2 + $0x120] sm:$0xff]
    %v161 = vld [vmem:[#allocation2 + $0x128] sm:$0xff]
    %v162 = vld [vmem:[#allocation2 + $0x130] sm:$0xff]
    %v163 = vld [vmem:[#allocation2 + $0x138] sm:$0xff]
    %v164 = vld [vmem:[#allocation2 + $0x140] sm:$0xff]
    %v165 = vld [vmem:[#allocation2 + $0x148] sm:$0xff]
    %v166 = vld [vmem:[#allocation2 + $0x150] sm:$0xff]
    %v167 = vld [vmem:[#allocation2 + $0x158] sm:$0xff]
    %v168 = vld [vmem:[#allocation2 + $0x160] sm:$0xff]
    %v169 = vld [vmem:[#allocation2 + $0x168] sm:$0xff]
    %v170 = vld [vmem:[#allocation2 + $0x170] sm:$0xff]
    %v171 = vld [vmem:[#allocation2 + $0x178] sm:$0xff]
    %v172 = vld [vmem:[#allocation2 + $0x180] sm:$0xff]
    %v173 = vld [vmem:[#allocation2 + $0x188] sm:$0xff]
    %v174 = vld [vmem:[#allocation2 + $0x190] sm:$0xff]
    %v175 = vld [vmem:[#allocation2 + $0x198] sm:$0xff]
    %v176 = vld [vmem:[#allocation2 + $0x1a0] sm:$0xff]
    %v177 = vld [vmem:[#allocation2 + $0x1a8] sm:$0xff]
    %v178 = vld [vmem:[#allocation2 + $0x1b0] sm:$0xff]
    %v179 = vld [vmem:[#allocation2 + $0x1b8] sm:$0xff]
    %v180 = vld [vmem:[#allocation2 + $0x1c0] sm:$0xff]
    %v181 = vld [vmem:[#allocation2 + $0x1c8] sm:$0xff]
    %v182 = vld [vmem:[#allocation2 + $0x1d0] sm:$0xff]
    %v183 = vld [vmem:[#allocation2 + $0x1d8] sm:$0xff]
    %v184 = vld [vmem:[#allocation2 + $0x1e0] sm:$0xff]
    %v185 = vld [vmem:[#allocation2 + $0x1e8] sm:$0xff]
    %v186 = vld [vmem:[#allocation2 + $0x1f0] sm:$0xff]
    %v187 = vld [vmem:[#allocation2 + $0x1f8] sm:$0xff]
    %v188 = vld [vmem:[%s4] sm:$0x3]
    %v190 = vperm.slane %v188, 0
    %v191 = vperm.slane %v188, 1
    %194 = vmatpush.msra.mxu0 %v154
    %195 = vmatpush.msra.mxu0 %v152
    %196 = vmatpush.msra.mxu0 %v150
    %197 = vmatpush.msra.mxu0 %v148
    %198 = vmatpush.msra.mxu0 %v146
    %199 = vmatpush.msra.mxu0 %v144
    %200 = vmatpush.msra.mxu0 %v142
    %201 = vmatpush.msra.mxu0 %v140
    %202 = vmatpush.msra.mxu0 %v138
    %203 = vmatpush.msra.mxu0 %v136
    %204 = vmatpush.msra.mxu0 %v134
    %205 = vmatpush.msra.mxu0 %v132
    %206 = vmatpush.msra.mxu0 %v130
    %207 = vmatpush.msra.mxu0 %v128
    %208 = vmatpush.msra.mxu0 %v126
    %209 = vmatpush.msra.mxu0 %v124
    %210 = vmatmul.f32.gmra.mxu0 %v122
    %v211 = vpop.f32.mrf.mxu0
    %v212 = vadd.f32 %v190, %v211
    %213 = vdwg.mxu0
    %214 = vmatpush.msra.mxu0 %v186
    %215 = vmatpush.msra.mxu0 %v184
    %216 = vmatpush.msra.mxu0 %v182
    %217 = vmatpush.msra.mxu0 %v180
    %218 = vmatpush.msra.mxu0 %v178
    %219 = vmatpush.msra.mxu0 %v176
    %220 = vmatpush.msra.mxu0 %v174
    %221 = vmatpush.msra.mxu0 %v172
    %222 = vmatpush.msra.mxu0 %v170
    %223 = vmatpush.msra.mxu0 %v168
    %224 = vmatpush.msra.mxu0 %v166
    %225 = vmatpush.msra.mxu0 %v164
    %226 = vmatpush.msra.mxu0 %v162
    %227 = vmatpush.msra.mxu0 %v160
    %228 = vmatpush.msra.mxu0 %v158
    %229 = vmatpush.msra.mxu0 %v156
    %230 = vmatmul.f32.gmra.mxu0 %v123
    %v231 = vpop.f32.mrf.mxu0
    %v232 = vadd.f32 %v212, %v231
    %233 = vdwg.mxu0
    %234 = vmatpush.msra.mxu0 %v155
    %235 = vmatpush.msra.mxu0 %v153
    %236 = vmatpush.msra.mxu0 %v151
    %237 = vmatpush.msra.mxu0 %v149
    %238 = vmatpush.msra.mxu0 %v147
    %239 = vmatpush.msra.mxu0 %v145
    %240 = vmatpush.msra.mxu0 %v143
    %241 = vmatpush.msra.mxu0 %v141
    %242 = vmatpush.msra.mxu0 %v139
    %243 = vmatpush.msra.mxu0 %v137
    %244 = vmatpush.msra.mxu0 %v135
    %245 = vmatpush.msra.mxu0 %v133
    %246 = vmatpush.msra.mxu0 %v131
    %247 = vmatpush.msra.mxu0 %v129
    %248 = vmatpush.msra.mxu0 %v127
    %249 = vmatpush.msra.mxu0 %v125
    %250 = vmatmul.f32.gmra.mxu0 %v122
    %v251 = vpop.f32.mrf.mxu0
    %v252 = vadd.f32 %v191, %v251
    %253 = vdwg.mxu0
    %254 = vmatpush.msra.mxu0 %v187
    %255 = vmatpush.msra.mxu0 %v185
    %256 = vmatpush.msra.mxu0 %v183
    %257 = vmatpush.msra.mxu0 %v181
    %258 = vmatpush.msra.mxu0 %v179
    %259 = vmatpush.msra.mxu0 %v177
    %260 = vmatpush.msra.mxu0 %v175
    %261 = vmatpush.msra.mxu0 %v173
    %262 = vmatpush.msra.mxu0 %v171
    %263 = vmatpush.msra.mxu0 %v169
    %264 = vmatpush.msra.mxu0 %v167
    %265 = vmatpush.msra.mxu0 %v165
    %266 = vmatpush.msra.mxu0 %v163
    %267 = vmatpush.msra.mxu0 %v161
    %268 = vmatpush.msra.mxu0 %v159
    %269 = vmatpush.msra.mxu0 %v157
    %270 = vmatmul.f32.gmra.mxu0 %v123
    %v271 = vpop.f32.mrf.mxu0
    %v272 = vadd.f32 %v252, %v271
    %273 = vdwg.mxu0
    %v274 = vmax.f32 %v232, 0.0
    %v275 = vmax.f32 %v272, 0.0
    %v276 = vld [vmem:[%s5] sm:$0xff]
    %v277 = vld [vmem:[%s5 + $0x8] sm:$0xff]
    %v278 = vld [vmem:[%s5 + $0x10] sm:$0xff]
    %v279 = vld [vmem:[%s5 + $0x18] sm:$0xff]
    %v280 = vld [vmem:[%s5 + $0x20] sm:$0xff]
    %v281 = vld [vmem:[%s5 + $0x28] sm:$0xff]
    %v282 = vld [vmem:[%s5 + $0x30] sm:$0xff]
    %v283 = vld [vmem:[%s5 + $0x38] sm:$0xff]
    %v284 = vld [vmem:[%s5 + $0x40] sm:$0xff]
    %v285 = vld [vmem:[%s5 + $0x48] sm:$0xff]
    %v286 = vld [vmem:[%s5 + $0x50] sm:$0xff]
    %v287 = vld [vmem:[%s5 + $0x58] sm:$0xff]
    %v288 = vld [vmem:[%s5 + $0x60] sm:$0xff]
    %v289 = vld [vmem:[%s5 + $0x68] sm:$0xff]
    %v290 = vld [vmem:[%s5 + $0x70] sm:$0xff]
    %v291 = vld [vmem:[%s5 + $0x78] sm:$0xff]
    %v292 = vld [vmem:[%s5 + $0x80] sm:$0xff]
    %v293 = vld [vmem:[%s5 + $0x88] sm:$0xff]
    %v294 = vld [vmem:[%s5 + $0x90] sm:$0xff]
    %v295 = vld [vmem:[%s5 + $0x98] sm:$0xff]
    %v296 = vld [vmem:[%s5 + $0xa0] sm:$0xff]
    %v297 = vld [vmem:[%s5 + $0xa8] sm:$0xff]
    %v298 = vld [vmem:[%s5 + $0xb0] sm:$0xff]
    %v299 = vld [vmem:[%s5 + $0xb8] sm:$0xff]
    %v300 = vld [vmem:[%s5 + $0xc0] sm:$0xff]
    %v301 = vld [vmem:[%s5 + $0xc8] sm:$0xff]
    %v302 = vld [vmem:[%s5 + $0xd0] sm:$0xff]
    %v303 = vld [vmem:[%s5 + $0xd8] sm:$0xff]
    %v304 = vld [vmem:[%s5 + $0xe0] sm:$0xff]
    %v305 = vld [vmem:[%s5 + $0xe8] sm:$0xff]
    %v306 = vld [vmem:[%s5 + $0xf0] sm:$0xff]
    %v307 = vld [vmem:[%s5 + $0xf8] sm:$0xff]
    %v308 = vld [vmem:[%s6] sm:$0x1]
    %309 = vmatpush.msra.mxu0 %v291
    %310 = vmatpush.msra.mxu0 %v290
    %311 = vmatpush.msra.mxu0 %v289
    %312 = vmatpush.msra.mxu0 %v288
    %313 = vmatpush.msra.mxu0 %v287
    %314 = vmatpush.msra.mxu0 %v286
    %315 = vmatpush.msra.mxu0 %v285
    %316 = vmatpush.msra.mxu0 %v284
    %317 = vmatpush.msra.mxu0 %v283
    %318 = vmatpush.msra.mxu0 %v282
    %319 = vmatpush.msra.mxu0 %v281
    %320 = vmatpush.msra.mxu0 %v280
    %321 = vmatpush.msra.mxu0 %v279
    %322 = vmatpush.msra.mxu0 %v278
    %323 = vmatpush.msra.mxu0 %v277
    %324 = vmatpush.msra.mxu0 %v276
    %325 = vmatmul.f32.gmra.mxu0 %v274
    %v326 = vpop.f32.mrf.mxu0
    %v327 = vadd.f32 %v308, %v326
    %328 = vdwg.mxu0
    %329 = vmatpush.msra.mxu0 %v307
    %330 = vmatpush.msra.mxu0 %v306
    %331 = vmatpush.msra.mxu0 %v305
    %332 = vmatpush.msra.mxu0 %v304
    %333 = vmatpush.msra.mxu0 %v303
    %334 = vmatpush.msra.mxu0 %v302
    %335 = vmatpush.msra.mxu0 %v301
    %336 = vmatpush.msra.mxu0 %v300
    %337 = vmatpush.msra.mxu0 %v299
    %338 = vmatpush.msra.mxu0 %v298
    %339 = vmatpush.msra.mxu0 %v297
    %340 = vmatpush.msra.mxu0 %v296
    %341 = vmatpush.msra.mxu0 %v295
    %342 = vmatpush.msra.mxu0 %v294
    %343 = vmatpush.msra.mxu0 %v293
    %344 = vmatpush.msra.mxu0 %v292
    %345 = vmatmul.f32.gmra.mxu0 %v275
    %v346 = vpop.f32.mrf.mxu0
    %v347 = vadd.f32 %v327, %v346
    %348 = vdwg.mxu0
    %vm349 = vcmask 253952
    %350 = vst.msk [vmem:[#allocation5] sm:$0x1] %vm349, %v347
    // Predicated region
    $region34: #{tpu_custom_call.1} parent=1 // pred_check
      _
    $region35: #{tpu_custom_call.1} parent=1 // pred_check_branch
      %352 = sbr.rel (0) target = $region37
    $region36: #{tpu_custom_call.1} parent=1 // pred_region
      %354 = vsyncadd [#allocation4], 0
      %s356 = sshll.u32 [#allocation5], 4
      %s357 = int_to_ptr.vmem [resolvable:$true] %s356
      %s358 = sshll.u32 %s7, 4
      %s359 = int_to_ptr.hbm [resolvable:$true] %s358
      %361 = dma.vmem_to_hbm [thread:$0]  %s357, 16, %s359, [#allocation4]
    $region37: #{tpu_custom_call.1} parent=1 // pred_fallthru
      _
    // Predicated region
    $region38: #{tpu_custom_call.1} parent=1 // pred_check
      _
    $region39: #{tpu_custom_call.1} parent=1 // pred_check_branch
      %363 = sbr.rel (0) target = $region41
    $region40: #{tpu_custom_call.1} parent=1 // pred_region
      %365 = dma.done [#allocation4], 16
    $region41: #{tpu_custom_call.1} parent=1 // pred_fallthru
      _
    %366 = vsyncpa [#allocation3], 1
    %367 = vsyncpa [#allocation4], 1

</llo_original>
